<compile_context>
chip_gen: v6e
topology: v6e:2x2x1
jax: 0.10.0
libtpu: 0.0.40
codegen_flags: <defaults>
</compile_context>

<pallas_src>
import functools

import jax
import jax.numpy as jnp
from jax import lax
from jax.experimental import pallas as pl
from jax.experimental.pallas import tpu as pltpu

LANE = 128
SLAB_ROWS = 16                    # (16,128) slab: 2 f32 vregs or 1 packed bf16 tile
SLAB = SLAB_ROWS * LANE           # 2048 elements per slab


def _max_slabs_per_step():
    """Per-grid-step block size in slabs (generation-aware, per perf review)."""
    try:
        vmem_bytes = getattr(pltpu.get_tpu_info(), "vmem_capacity_bytes", 64 << 20)
    except Exception:
        vmem_bytes = 64 << 20
    # 512 slabs  -> 4 MiB / f32 input / step (v7x: 64 MiB VMEM, stay modest)
    # 1024 slabs -> 8 MiB / f32 input / step (v5e / v6e: 128 MiB VMEM)
    return 1024 if vmem_bytes >= (96 << 20) else 512


def _partial_sums_kernel(pred_ref, tgt_ref, out_ref, acc_ref, *,
                         steps_per_core, total_blocks, grid_blocks,
                         slab_blk, valid_in_last, n_terms, binary):
    """Accumulates per-lane (SLAB_ROWS, LANE) partial sums of the reduction terms.

    acc slots: 0 sum(x*t)  1 sum(x)  2 sum(t)  3 sum(softplus(-x))
               4 sum(t*softplus(-x))  [5 count(t==0)  6 count(t==1)]
    """
    c = pl.program_id(0)          # core axis ("parallel")
    i = pl.program_id(1)          # block axis ("arbitrary")

    @pl.when(i == 0)
    def _init():
        acc_ref[...] = jnp.zeros_like(acc_ref)

    def accumulate(n_slabs_here):   # n_slabs_here is a static Python int
        def body(s, carry):
            x = pred_ref[s].astype(jnp.float32)          # (16, 128)
            t = tgt_ref[s].astype(jnp.float32)
            # stable softplus(-x) = max(-x,0) + log1p(exp(-|x|)); exp/log1p -> EUP
            sp = jnp.maximum(-x, 0.0) + jnp.log1p(jnp.exp(-jnp.abs(x)))
            new = [carry[0] + x * t,
                   carry[1] + x,
                   carry[2] + t,
                   carry[3] + sp,
                   carry[4] + t * sp]
            if not binary:
                new.append(carry[5] + (t == 0.0).astype(jnp.float32))
                new.append(carry[6] + (t == 1.0).astype(jnp.float32))
            return tuple(new)

        zero = jnp.zeros((SLAB_ROWS, LANE), jnp.float32)
        carry = lax.fori_loop(0, n_slabs_here, body, (zero,) * n_terms,
                              unroll=max(1, min(4, n_slabs_here)))
        for k in range(n_terms):
            acc_ref[k] += carry[k]

    blk = c * steps_per_core + i
    ragged = valid_in_last != slab_blk
    full_blocks = total_blocks - 1 if ragged else total_blocks

    if (not ragged) and grid_blocks == total_blocks:
        # Every grid point maps to a full, in-range block: no branching needed.
        accumulate(slab_blk)
    else:
        @pl.when(blk < full_blocks)
        def _full():
            accumulate(slab_blk)

        if ragged:
            @pl.when(blk == total_blocks - 1)
            def _last():
                accumulate(valid_in_last)    # static partial trip count
        # blk >= total_blocks (idle padding block on one core): accumulate nothing,
        # so this core's flushed partials stay correct.

    @pl.when(i == pl.num_programs(1) - 1)
    def _flush():
        out_ref[0] = acc_ref[...]


def _run_partial_sums(pred3, tgt3, n_terms, binary):
    n_slabs = pred3.shape[0]
    slab_blk = min(_max_slabs_per_step(), n_slabs)
    total_blocks = pl.cdiv(n_slabs, slab_blk)
    num_cores = 2 if total_blocks > 1 else 1        # v7x: one block range per TC
    steps_per_core = pl.cdiv(total_blocks, num_cores)
    grid_blocks = num_cores * steps_per_core
    valid_in_last = n_slabs - (total_blocks - 1) * slab_blk

    kernel = functools.partial(
        _partial_sums_kernel,
        steps_per_core=steps_per_core, total_blocks=total_blocks,
        grid_blocks=grid_blocks, slab_blk=slab_blk,
        valid_in_last=valid_in_last, n_terms=n_terms, binary=binary)

    def in_map(c, i):
        # Clamp idle padding blocks to a valid block (their data is never read).
        return (jnp.minimum(c * steps_per_core + i, total_blocks - 1), 0, 0)

    # 2 inputs x 2 pipeline buffers x block + scratch/output/temporaries margin.
    block_bytes = slab_blk * SLAB * (pred3.dtype.itemsize + tgt3.dtype.itemsize)
    vmem_limit = int(2 * block_bytes + (8 << 20))

    return pl.pallas_call(
        kernel,
        out_shape=jax.ShapeDtypeStruct((num_cores, n_terms, SLAB_ROWS, LANE),
                                       jnp.float32),
        grid_spec=pltpu.PrefetchScalarGridSpec(
            num_scalar_prefetch=0,
            grid=(num_cores, steps_per_core),
            in_specs=[pl.BlockSpec((slab_blk, SLAB_ROWS, LANE), in_map),
                      pl.BlockSpec((slab_blk, SLAB_ROWS, LANE), in_map)],
            out_specs=pl.BlockSpec((1, n_terms, SLAB_ROWS, LANE),
                                   lambda c, i: (c, 0, 0, 0)),
            scratch_shapes=[pltpu.VMEM((n_terms, SLAB_ROWS, LANE), jnp.float32)],
        ),
        compiler_params=pltpu.CompilerParams(
            dimension_semantics=("parallel", "arbitrary"),
            vmem_limit_bytes=vmem_limit),
    )(pred3, tgt3)


def _term_sums_jnp(x, t, binary):
    """Plain-JAX partial sums for the tiny (< SLAB) ragged tail."""
    x = x.astype(jnp.float32).reshape(-1)
    t = t.astype(jnp.float32).reshape(-1)
    sp = jnp.maximum(-x, 0.0) + jnp.log1p(jnp.exp(-jnp.abs(x)))
    sums = [jnp.sum(x * t), jnp.sum(x), jnp.sum(t), jnp.sum(sp), jnp.sum(t * sp)]
    if not binary:
        sums.append(jnp.sum((t == 0.0).astype(jnp.float32)))
        sums.append(jnp.sum((t == 1.0).astype(jnp.float32)))
    return jnp.stack(sums)


def _native_or_f32(x):
    if x.dtype == jnp.float32 or x.dtype == jnp.bfloat16:
        return x
    # TODO(synk): add a packed int8/bool target path ((n,32,128) slabs) to cut
    # HBM bytes further instead of upcasting here.
    return x.astype(jnp.float32)


@functools.partial(jax.jit,
                   static_argnames=("dice_weight", "bce_weight", "smooth",
                                    "binary_targets"))
def combined_loss(pred, target, *, dice_weight=0.5, bce_weight=0.5, smooth=1.0,
                  binary_targets=False):
    """Forward pass of CombinedLoss (DiceLoss + pos-weighted BCEWithLogits).

    NOTE: the PyTorch module also computes a `focal` term but never uses it in
    the returned value, so it is intentionally omitted here.
    """
    n = pred.size
    n_terms = 5 if binary_targets else 7

    pred_f = _native_or_f32(pred.reshape(-1))
    tgt_f = _native_or_f32(target.reshape(-1))

    n_slabs = n // SLAB
    n_bulk = n_slabs * SLAB
    rem = n - n_bulk

    totals = jnp.zeros((n_terms,), jnp.float32)
    if n_slabs > 0:
        if rem == 0:
            pred3 = pred_f.reshape(n_slabs, SLAB_ROWS, LANE)   # zero-copy view
            tgt3 = tgt_f.reshape(n_slabs, SLAB_ROWS, LANE)
        else:
            # TODO(synk): take the ragged bulk boundary inside the kernel (row-
            # granular last block) to avoid this prefix copy when n % 2048 != 0.
            pred3 = pred_f[:n_bulk].reshape(n_slabs, SLAB_ROWS, LANE)
            tgt3 = tgt_f[:n_bulk].reshape(n_slabs, SLAB_ROWS, LANE)
        partials = _run_partial_sums(pred3, tgt3, n_terms, binary_targets)
        totals = totals + partials.sum(axis=(0, 2, 3))
    if rem:
        totals = totals + _term_sums_jnp(pred_f[n_bulk:], tgt_f[n_bulk:],
                                         binary_targets)

    s_xt, s_x, s_t, s_sp, s_tsp = (totals[0], totals[1], totals[2],
                                   totals[3], totals[4])
    if binary_targets:
        pos = s_t
        neg = float(n) - pos
    else:
        neg, pos = totals[5], totals[6]
    total_cnt = neg + pos
    # NOTE: pos == 0 yields inf/NaN, matching the PyTorch reference behavior.
    pos_weight = (neg / total_cnt) / (pos / total_cnt)

    # BCEWithLogits(pos_weight), reduction='mean':
    #   per-elem = (1 - t) * x + (1 + (pw - 1) * t) * softplus(-x)
    bce = ((s_x - s_xt) + s_sp + (pos_weight - 1.0) * s_tsp) / float(n)

    # DiceLoss on the raw predictions (matching the PyTorch module).
    dice = (2.0 * s_xt + smooth) / (s_x + s_t + smooth)
    dice_loss = 1.0 - dice

    return dice_weight * dice_loss + bce_weight * bce


def _reference_combined_loss(pred, target, dice_weight=0.5, bce_weight=0.5,
                             smooth=1.0):
    p = pred.reshape(-1).astype(jnp.float32)
    t = target.reshape(-1).astype(jnp.float32)
    inter = jnp.sum(p * t)
    union = jnp.sum(p) + jnp.sum(t)
    dice = (2.0 * inter + smooth) / (union + smooth)
    dice_loss = 1.0 - dice
    neg = jnp.sum((t == 0.0).astype(jnp.float32))
    pos = jnp.sum((t == 1.0).astype(jnp.float32))
    total = neg + pos
    pw = (neg / total) / (pos / total)
    sp = jax.nn.softplus(-p)
    bce = jnp.mean((1.0 - t) * p + (1.0 + (pw - 1.0) * t) * sp)
    return dice_weight * dice_loss + bce_weight * bce


if __name__ == "__main__":
    key = jax.random.PRNGKey(0)
    k1, k2 = jax.random.split(key)
    # CombinedLoss has no learned parameters; inputs are segmentation logits
    # and a binary mask of the same shape.
    pred = jax.random.normal(k1, (2, 4, 16, 16), dtype=jnp.float32)
    target = jax.random.bernoulli(k2, 0.5, (2, 4, 16, 16)).astype(jnp.float32)

    loss = jax.block_until_ready(combined_loss(pred, target))
    ref = jax.block_until_ready(_reference_combined_loss(pred, target))
    assert jnp.allclose(loss, ref, rtol=1e-5, atol=1e-5), (loss, ref)

    # Binary-target fast path (drops the two equality-count streams).
    loss_bin = jax.block_until_ready(
        combined_loss(pred, target, binary_targets=True))
    assert jnp.allclose(loss_bin, ref, rtol=1e-5, atol=1e-5), (loss_bin, ref)

    print("KERNEL_OK")
</pallas_src>

<mosaic_0001>
module attributes {stable_mosaic.version = 11 : i64} {
  func.func @_partial_sums_kernel(%arg0: i32, %arg1: i32, %arg2: memref<1x16x128xf32, #tpu.memory_space<vmem>>, %arg3: memref<1x16x128xf32, #tpu.memory_space<vmem>>, %arg4: memref<1x7x16x128xf32, #tpu.memory_space<vmem>>, %arg5: memref<7x16x128xf32, #tpu.memory_space<vmem>>) attributes {dimension_semantics = [#tpu.dimension_semantics<parallel>, #tpu.dimension_semantics<arbitrary>], iteration_bounds = array<i64: 1, 1>, scalar_prefetch = 0 : i64, scratch_operands = 1 : i64, tpu.core_type = #tpu.core_type<tc>, window_params = [{transform_indices = @transform_0, window_bounds = array<i64: 1, 16, 128>}, {transform_indices = @transform_1, window_bounds = array<i64: 1, 16, 128>}, {transform_indices = @transform_2, window_bounds = array<i64: 1, 7, 16, 128>}]} {
    %c0_i32 = arith.constant 0 : i32
    %0 = arith.cmpi eq, %arg1, %c0_i32 : i32
    %1 = arith.extui %0 : i1 to i32
    %c0_i32_0 = arith.constant 0 : i32
    %2 = arith.cmpi ne, %1, %c0_i32_0 : i32
    scf.if %2 {
      %cst_48 = arith.constant 0.000000e+00 : f32
      %82 = vector.broadcast %cst_48 : f32 to vector<7x16x128xf32>
      %c0_49 = arith.constant 0 : index
      %c0_50 = arith.constant 0 : index
      %c0_51 = arith.constant 0 : index
      %83 = vector.load %arg5[%c0_49, %c0_50, %c0_51] : memref<7x16x128xf32, #tpu.memory_space<vmem>>, vector<7x16x128xf32>
      tpu.vector_store %arg5[%c0_49, %c0_50, %c0_51], %82 {strides = array<i32>} : memref<7x16x128xf32, #tpu.memory_space<vmem>>, vector<7x16x128xf32>,
    } else {
    }
    %cst = arith.constant 0.000000e+00 : f32
    %3 = vector.broadcast %cst : f32 to vector<16x128xf32>
    %c0_i32_1 = arith.constant 0 : i32
    %4 = arith.index_cast %c0_i32_1 : i32 to index
    %c0 = arith.constant 0 : index
    %c0_2 = arith.constant 0 : index
    %5 = vector.load %arg2[%4, %c0, %c0_2] : memref<1x16x128xf32, #tpu.memory_space<vmem>>, vector<1x16x128xf32>
    %6 = vector.shape_cast %5 : vector<1x16x128xf32> to vector<16x128xf32>
    %7 = arith.index_cast %c0_i32_1 : i32 to index
    %c0_3 = arith.constant 0 : index
    %c0_4 = arith.constant 0 : index
    %8 = vector.load %arg3[%7, %c0_3, %c0_4] : memref<1x16x128xf32, #tpu.memory_space<vmem>>, vector<1x16x128xf32>
    %9 = vector.shape_cast %8 : vector<1x16x128xf32> to vector<16x128xf32>
    %cst_5 = arith.constant 0.000000e+00 : f32
    %10 = vector.broadcast %cst_5 : f32 to vector<16x128xf32>
    %11 = arith.subf %10, %6 : vector<16x128xf32>
    %cst_6 = arith.constant 0.000000e+00 : f32
    %12 = vector.broadcast %cst_6 : f32 to vector<16x128xf32>
    %13 = arith.maximumf %11, %12 : vector<16x128xf32>
    %14 = math.absf %6 : vector<16x128xf32>
    %cst_7 = arith.constant 0.000000e+00 : f32
    %15 = vector.broadcast %cst_7 : f32 to vector<16x128xf32>
    %16 = arith.subf %15, %14 : vector<16x128xf32>
    %17 = math.exp %16 : vector<16x128xf32>
    %18 = math.log1p %17 : vector<16x128xf32>
    %19 = arith.addf %13, %18 : vector<16x128xf32>
    %20 = arith.mulf %6, %9 : vector<16x128xf32>
    %21 = arith.addf %3, %20 : vector<16x128xf32>
    %22 = arith.addf %3, %6 : vector<16x128xf32>
    %23 = arith.addf %3, %9 : vector<16x128xf32>
    %24 = arith.addf %3, %19 : vector<16x128xf32>
    %25 = arith.mulf %9, %19 : vector<16x128xf32>
    %26 = arith.addf %3, %25 : vector<16x128xf32>
    %cst_8 = arith.constant 0.000000e+00 : f32
    %27 = vector.broadcast %cst_8 : f32 to vector<16x128xf32>
    %28 = arith.cmpf oeq, %9, %27 : vector<16x128xf32>
    %29 = arith.extui %28 : vector<16x128xi1> to vector<16x128xi32>
    %30 = arith.sitofp %29 : vector<16x128xi32> to vector<16x128xf32>
    %31 = arith.addf %3, %30 : vector<16x128xf32>
    %cst_9 = arith.constant 1.000000e+00 : f32
    %32 = vector.broadcast %cst_9 : f32 to vector<16x128xf32>
    %33 = arith.cmpf oeq, %9, %32 : vector<16x128xf32>
    %34 = arith.extui %33 : vector<16x128xi1> to vector<16x128xi32>
    %35 = arith.sitofp %34 : vector<16x128xi32> to vector<16x128xf32>
    %36 = arith.addf %3, %35 : vector<16x128xf32>
    %c1_i32 = arith.constant 1 : i32
    %c0_10 = arith.constant 0 : index
    %c0_11 = arith.constant 0 : index
    %c0_12 = arith.constant 0 : index
    %37 = vector.load %arg5[%c0_10, %c0_11, %c0_12] : memref<7x16x128xf32, #tpu.memory_space<vmem>>, vector<1x16x128xf32>
    %38 = vector.shape_cast %37 : vector<1x16x128xf32> to vector<16x128xf32>
    %39 = arith.addf %38, %21 : vector<16x128xf32>
    %c0_13 = arith.constant 0 : index
    %c0_14 = arith.constant 0 : index
    %c0_15 = arith.constant 0 : index
    %40 = vector.load %arg5[%c0_13, %c0_14, %c0_15] : memref<7x16x128xf32, #tpu.memory_space<vmem>>, vector<1x16x128xf32>
    %41 = vector.shape_cast %40 : vector<1x16x128xf32> to vector<16x128xf32>
    %42 = vector.shape_cast %39 : vector<16x128xf32> to vector<1x16x128xf32>
    tpu.vector_store %arg5[%c0_13, %c0_14, %c0_15], %42 {strides = array<i32>} : memref<7x16x128xf32, #tpu.memory_space<vmem>>, vector<1x16x128xf32>,
    %c1 = arith.constant 1 : index
    %c0_16 = arith.constant 0 : index
    %c0_17 = arith.constant 0 : index
    %43 = vector.load %arg5[%c1, %c0_16, %c0_17] : memref<7x16x128xf32, #tpu.memory_space<vmem>>, vector<1x16x128xf32>
    %44 = vector.shape_cast %43 : vector<1x16x128xf32> to vector<16x128xf32>
    %45 = arith.addf %44, %22 : vector<16x128xf32>
    %c1_18 = arith.constant 1 : index
    %c0_19 = arith.constant 0 : index
    %c0_20 = arith.constant 0 : index
    %46 = vector.load %arg5[%c1_18, %c0_19, %c0_20] : memref<7x16x128xf32, #tpu.memory_space<vmem>>, vector<1x16x128xf32>
    %47 = vector.shape_cast %46 : vector<1x16x128xf32> to vector<16x128xf32>
    %48 = vector.shape_cast %45 : vector<16x128xf32> to vector<1x16x128xf32>
    tpu.vector_store %arg5[%c1_18, %c0_19, %c0_20], %48 {strides = array<i32>} : memref<7x16x128xf32, #tpu.memory_space<vmem>>, vector<1x16x128xf32>,
    %c2 = arith.constant 2 : index
    %c0_21 = arith.constant 0 : index
    %c0_22 = arith.constant 0 : index
    %49 = vector.load %arg5[%c2, %c0_21, %c0_22] : memref<7x16x128xf32, #tpu.memory_space<vmem>>, vector<1x16x128xf32>
    %50 = vector.shape_cast %49 : vector<1x16x128xf32> to vector<16x128xf32>
    %51 = arith.addf %50, %23 : vector<16x128xf32>
    %c2_23 = arith.constant 2 : index
    %c0_24 = arith.constant 0 : index
    %c0_25 = arith.constant 0 : index
    %52 = vector.load %arg5[%c2_23, %c0_24, %c0_25] : memref<7x16x128xf32, #tpu.memory_space<vmem>>, vector<1x16x128xf32>
    %53 = vector.shape_cast %52 : vector<1x16x128xf32> to vector<16x128xf32>
    %54 = vector.shape_cast %51 : vector<16x128xf32> to vector<1x16x128xf32>
    tpu.vector_store %arg5[%c2_23, %c0_24, %c0_25], %54 {strides = array<i32>} : memref<7x16x128xf32, #tpu.memory_space<vmem>>, vector<1x16x128xf32>,
    %c3 = arith.constant 3 : index
    %c0_26 = arith.constant 0 : index
    %c0_27 = arith.constant 0 : index
    %55 = vector.load %arg5[%c3, %c0_26, %c0_27] : memref<7x16x128xf32, #tpu.memory_space<vmem>>, vector<1x16x128xf32>
    %56 = vector.shape_cast %55 : vector<1x16x128xf32> to vector<16x128xf32>
    %57 = arith.addf %56, %24 : vector<16x128xf32>
    %c3_28 = arith.constant 3 : index
    %c0_29 = arith.constant 0 : index
    %c0_30 = arith.constant 0 : index
    %58 = vector.load %arg5[%c3_28, %c0_29, %c0_30] : memref<7x16x128xf32, #tpu.memory_space<vmem>>, vector<1x16x128xf32>
    %59 = vector.shape_cast %58 : vector<1x16x128xf32> to vector<16x128xf32>
    %60 = vector.shape_cast %57 : vector<16x128xf32> to vector<1x16x128xf32>
    tpu.vector_store %arg5[%c3_28, %c0_29, %c0_30], %60 {strides = array<i32>} : memref<7x16x128xf32, #tpu.memory_space<vmem>>, vector<1x16x128xf32>,
    %c4 = arith.constant 4 : index
    %c0_31 = arith.constant 0 : index
    %c0_32 = arith.constant 0 : index
    %61 = vector.load %arg5[%c4, %c0_31, %c0_32] : memref<7x16x128xf32, #tpu.memory_space<vmem>>, vector<1x16x128xf32>
    %62 = vector.shape_cast %61 : vector<1x16x128xf32> to vector<16x128xf32>
    %63 = arith.addf %62, %26 : vector<16x128xf32>
    %c4_33 = arith.constant 4 : index
    %c0_34 = arith.constant 0 : index
    %c0_35 = arith.constant 0 : index
    %64 = vector.load %arg5[%c4_33, %c0_34, %c0_35] : memref<7x16x128xf32, #tpu.memory_space<vmem>>, vector<1x16x128xf32>
    %65 = vector.shape_cast %64 : vector<1x16x128xf32> to vector<16x128xf32>
    %66 = vector.shape_cast %63 : vector<16x128xf32> to vector<1x16x128xf32>
    tpu.vector_store %arg5[%c4_33, %c0_34, %c0_35], %66 {strides = array<i32>} : memref<7x16x128xf32, #tpu.memory_space<vmem>>, vector<1x16x128xf32>,
    %c5 = arith.constant 5 : index
    %c0_36 = arith.constant 0 : index
    %c0_37 = arith.constant 0 : index
    %67 = vector.load %arg5[%c5, %c0_36, %c0_37] : memref<7x16x128xf32, #tpu.memory_space<vmem>>, vector<1x16x128xf32>
    %68 = vector.shape_cast %67 : vector<1x16x128xf32> to vector<16x128xf32>
    %69 = arith.addf %68, %31 : vector<16x128xf32>
    %c5_38 = arith.constant 5 : index
    %c0_39 = arith.constant 0 : index
    %c0_40 = arith.constant 0 : index
    %70 = vector.load %arg5[%c5_38, %c0_39, %c0_40] : memref<7x16x128xf32, #tpu.memory_space<vmem>>, vector<1x16x128xf32>
    %71 = vector.shape_cast %70 : vector<1x16x128xf32> to vector<16x128xf32>
    %72 = vector.shape_cast %69 : vector<16x128xf32> to vector<1x16x128xf32>
    tpu.vector_store %arg5[%c5_38, %c0_39, %c0_40], %72 {strides = array<i32>} : memref<7x16x128xf32, #tpu.memory_space<vmem>>, vector<1x16x128xf32>,
    %c6 = arith.constant 6 : index
    %c0_41 = arith.constant 0 : index
    %c0_42 = arith.constant 0 : index
    %73 = vector.load %arg5[%c6, %c0_41, %c0_42] : memref<7x16x128xf32, #tpu.memory_space<vmem>>, vector<1x16x128xf32>
    %74 = vector.shape_cast %73 : vector<1x16x128xf32> to vector<16x128xf32>
    %75 = arith.addf %74, %36 : vector<16x128xf32>
    %c6_43 = arith.constant 6 : index
    %c0_44 = arith.constant 0 : index
    %c0_45 = arith.constant 0 : index
    %76 = vector.load %arg5[%c6_43, %c0_44, %c0_45] : memref<7x16x128xf32, #tpu.memory_space<vmem>>, vector<1x16x128xf32>
    %77 = vector.shape_cast %76 : vector<1x16x128xf32> to vector<16x128xf32>
    %78 = vector.shape_cast %75 : vector<16x128xf32> to vector<1x16x128xf32>
    tpu.vector_store %arg5[%c6_43, %c0_44, %c0_45], %78 {strides = array<i32>} : memref<7x16x128xf32, #tpu.memory_space<vmem>>, vector<1x16x128xf32>,
    %c0_i32_46 = arith.constant 0 : i32
    %79 = arith.cmpi eq, %arg1, %c0_i32_46 : i32
    %80 = arith.extui %79 : i1 to i32
    %c0_i32_47 = arith.constant 0 : i32
    %81 = arith.cmpi ne, %80, %c0_i32_47 : i32
    scf.if %81 {
      %c0_48 = arith.constant 0 : index
      %c0_49 = arith.constant 0 : index
      %c0_50 = arith.constant 0 : index
      %82 = vector.load %arg5[%c0_48, %c0_49, %c0_50] : memref<7x16x128xf32, #tpu.memory_space<vmem>>, vector<7x16x128xf32>
      %c0_51 = arith.constant 0 : index
      %c0_52 = arith.constant 0 : index
      %c0_53 = arith.constant 0 : index
      %c0_54 = arith.constant 0 : index
      %83 = vector.load %arg4[%c0_51, %c0_52, %c0_53, %c0_54] : memref<1x7x16x128xf32, #tpu.memory_space<vmem>>, vector<1x7x16x128xf32>
      %84 = vector.shape_cast %83 : vector<1x7x16x128xf32> to vector<7x16x128xf32>
      %85 = vector.shape_cast %82 : vector<7x16x128xf32> to vector<1x7x16x128xf32>
      tpu.vector_store %arg4[%c0_51, %c0_52, %c0_53, %c0_54], %85 {strides = array<i32>} : memref<1x7x16x128xf32, #tpu.memory_space<vmem>>, vector<1x7x16x128xf32>,
    } else {
    }
    return
  }
  func.func @transform_0(%arg0: i32, %arg1: i32) -> (i32, i32, i32) {
    %c1_i32 = arith.constant 1 : i32
    %0 = arith.muli %arg0, %c1_i32 : i32
    %1 = arith.addi %0, %arg1 : i32
    %c0_i32 = arith.constant 0 : i32
    %2 = arith.minsi %1, %c0_i32 : i32
    %c0_i32_0 = arith.constant 0 : i32
    %c0_i32_1 = arith.constant 0 : i32
    %c0_i32_2 = arith.constant 0 : i32
    return %2, %c0_i32_0, %c0_i32_1 : i32, i32, i32
  }
  func.func @transform_1(%arg0: i32, %arg1: i32) -> (i32, i32, i32) {
    %c1_i32 = arith.constant 1 : i32
    %0 = arith.muli %arg0, %c1_i32 : i32
    %1 = arith.addi %0, %arg1 : i32
    %c0_i32 = arith.constant 0 : i32
    %2 = arith.minsi %1, %c0_i32 : i32
    %c0_i32_0 = arith.constant 0 : i32
    %c0_i32_1 = arith.constant 0 : i32
    %c0_i32_2 = arith.constant 0 : i32
    return %2, %c0_i32_0, %c0_i32_1 : i32, i32, i32
  }
  func.func @transform_2(%arg0: i32, %arg1: i32) -> (i32, i32, i32, i32) {
    %c0_i32 = arith.constant 0 : i32
    %c0_i32_0 = arith.constant 0 : i32
    %c0_i32_1 = arith.constant 0 : i32
    %c0_i32_2 = arith.constant 0 : i32
    return %arg0, %c0_i32, %c0_i32_0, %c0_i32_1 : i32, i32, i32, i32
  }
}

</mosaic_0001>

<llo_original>
// kernel: combined_loss.1
$region0: #{combined_loss.1}
  #allocation0 [shape = 'u32[]', space=smem, size = 0x4, offset = 0x4, fixed_abs, tag = 'smem constant byte address 0x4 - core index']
  #allocation1 [shape = 'u32[144,128]{1,0:T(1,128)}', space=vmem, size = 0x12000, scoped, tag = 'internal scratch']
  #allocation2 [shape = 'f32[7,16,128]{2,1,0:T(8,128)}', space=vmem, size = 0xe000, scoped, tag = 'scratch operand']
  %s0 = inlined_call_operand.vmem [shape: f32[1,16,128], index: 0, kind: input, shape index: {}]
  %s1 = inlined_call_operand.vmem [shape: f32[1,16,128], index: 1, kind: input, shape index: {}]
  %s2 = inlined_call_operand.vmem [shape: f32[1,7,16,128], index: 2, kind: output, shape index: {}]
  %s3 = sld [smem:[#allocation0]]
  $region26: #{combined_loss.1} parent=0
    _
  %s5 = ssub.s32 1, %s3
  %s6 = scalar_select 0, %s5, %s3
  // Predicated region
  $region2: #{combined_loss.1} parent=0 // pred_check
    _
  $region3: #{combined_loss.1} parent=0 // pred_check_branch
    %8 = sbr.rel (0) target = $region5
  $region4: #{combined_loss.1} parent=0 // pred_region
    %s9 = sadd.s32 0, 0
    %p10 = scmp.lt.s32.totalorder %s9, 0
    %s11 = scalar_select %p10, %s9, 0
    %p12 = scmp.lt.s32.totalorder %s11, 0
    %s13 = scalar_select %p12, %s11, 0
    %s14 = smul.addr %s13, 2
    %s15 = smul.addr %s14, 8
    %s16 = scalar_lea.vmem %s0, %s15
    %s17 = sadd.s32 0, 0
    %p18 = scmp.lt.s32.totalorder %s17, 0
    %s19 = scalar_select %p18, %s17, 0
  $region5: #{combined_loss.1} parent=0 // pred_fallthru
    _
  // Predicated region
  $region6: #{combined_loss.1} parent=0 // pred_check
    _
  $region7: #{combined_loss.1} parent=0 // pred_check_branch
    %21 = sbr.rel (0) target = $region9
  $region8: #{combined_loss.1} parent=0 // pred_region
    %s22 = sadd.s32 0, 0
    %p23 = scmp.lt.s32.totalorder %s22, 0
    %s24 = scalar_select %p23, %s22, 0
    %p25 = scmp.lt.s32.totalorder %s24, 0
    %s26 = scalar_select %p25, %s24, 0
    %s27 = smul.addr %s26, 2
    %s28 = smul.addr %s27, 8
    %s29 = scalar_lea.vmem %s1, %s28
    %s30 = sadd.s32 0, 0
    %p31 = scmp.lt.s32.totalorder %s30, 0
    %s32 = scalar_select %p31, %s30, 0
  $region9: #{combined_loss.1} parent=0 // pred_fallthru
    _
  %s33 = sadd.s32 0, 0
  %p34 = scmp.lt.s32.totalorder %s33, 0
  %s35 = scalar_select %p34, %s33, 0
  %p36 = scmp.lt.s32.totalorder %s35, 0
  %s37 = scalar_select %p36, %s35, 0
  %s38 = smul.addr %s37, 2
  %s39 = smul.addr %s38, 8
  %s40 = scalar_lea.vmem %s0, %s39
  %s41 = sadd.s32 0, 0
  %p42 = scmp.lt.s32.totalorder %s41, 0
  %s43 = scalar_select %p42, %s41, 0
  %p44 = scmp.lt.s32.totalorder %s43, 0
  %s45 = scalar_select %p44, %s43, 0
  %s46 = smul.addr %s45, 2
  %s47 = smul.addr %s46, 8
  %s48 = scalar_lea.vmem %s1, %s47
  %s49 = sadd.s32 0, 0
  %p50 = scmp.lt.s32.totalorder %s49, 0
  %s51 = scalar_select %p50, %s49, 0
  %p52 = scmp.lt.s32.totalorder %s51, 0
  %s53 = scalar_select %p52, %s51, 0
  %s54 = smul.addr %s53, 2
  %s55 = smul.addr %s54, 8
  %s56 = scalar_lea.vmem %s0, %s55
  %s57 = sadd.s32 0, 0
  %p58 = scmp.lt.s32.totalorder %s57, 0
  %s59 = scalar_select %p58, %s57, 0
  %s60 = sadd.s32 0, 0
  %p61 = scmp.lt.s32.totalorder %s60, 0
  %s62 = scalar_select %p61, %s60, 0
  %p63 = scmp.lt.s32.totalorder %s62, 0
  %s64 = scalar_select %p63, %s62, 0
  %s65 = smul.addr %s64, 2
  %s66 = smul.addr %s65, 8
  %s67 = scalar_lea.vmem %s1, %s66
  %s68 = sadd.s32 0, 0
  %p69 = scmp.lt.s32.totalorder %s68, 0
  %s70 = scalar_select %p69, %s68, 0
  %p71 = scmp.eq.s32.totalorder 0, 0
  // Predicated region
  $region10: #{combined_loss.1} parent=0 // pred_check
    %p72 = pneg %p71
  $region11: #{combined_loss.1} parent=0 // pred_check_branch
    %74 = sbr.rel (%p72) target = $region13
  $region12: #{combined_loss.1} parent=0 // pred_region
    %75 = vst [vmem:[#allocation2] sm:$0xff] 0.0
    %76 = vst [vmem:[#allocation2 + $0x8] sm:$0xff] 0.0
    %77 = vst [vmem:[#allocation2 + $0x10] sm:$0xff] 0.0
    %78 = vst [vmem:[#allocation2 + $0x18] sm:$0xff] 0.0
    %79 = vst [vmem:[#allocation2 + $0x20] sm:$0xff] 0.0
    %80 = vst [vmem:[#allocation2 + $0x28] sm:$0xff] 0.0
    %81 = vst [vmem:[#allocation2 + $0x30] sm:$0xff] 0.0
    %82 = vst [vmem:[#allocation2 + $0x38] sm:$0xff] 0.0
    %83 = vst [vmem:[#allocation2 + $0x40] sm:$0xff] 0.0
    %84 = vst [vmem:[#allocation2 + $0x48] sm:$0xff] 0.0
    %85 = vst [vmem:[#allocation2 + $0x50] sm:$0xff] 0.0
    %86 = vst [vmem:[#allocation2 + $0x58] sm:$0xff] 0.0
    %87 = vst [vmem:[#allocation2 + $0x60] sm:$0xff] 0.0
    %88 = vst [vmem:[#allocation2 + $0x68] sm:$0xff] 0.0
  $region13: #{combined_loss.1} parent=0 // pred_fallthru
    _
  %v89 = vld [vmem:[%s56] sm:$0xff]
  %v90 = vld [vmem:[%s56 + $0x8] sm:$0xff]
  %v91 = vld [vmem:[%s67] sm:$0xff]
  %v92 = vld [vmem:[%s67 + $0x8] sm:$0xff]
  %v93 = vsub.f32 0.0, %v89
  %v94 = vsub.f32 0.0, %v90
  %v95 = vmax.f32 %v93, 0.0
  %v96 = vmax.f32 %v94, 0.0
  %v97 = vand.u32 2147483647, %v89
  %v98 = vand.u32 2147483647, %v90
  %v99 = vsub.f32 0.0, %v97
  %v100 = vsub.f32 0.0, %v98
  %v101 = vmul.f32 %v99, 1.442695
  %v102 = vpow.pop %v101
  %v103 = vmul.f32 %v100, 1.442695
  %v104 = vpow.pop %v103
  %v105 = vadd.f32 %v102, 1.0
  %v106 = vlog2.pop %v105
  %v107 = vmul.f32 %v106, 0.6931472
  %v108 = vmul.f32 -0.5, %v102
  %v109 = vadd.f32 %v108, 1.0
  %v110 = vmul.f32 %v109, %v102
  %v111 = vand.u32 2147483647, %v102
  %vm112 = vcmp.lt.f32.partialorder %v111, 0.0004427343
  %v113 = vsel %vm112, %v110, %v107
  %v114 = vadd.f32 %v104, 1.0
  %v115 = vlog2.pop %v114
  %v116 = vmul.f32 %v115, 0.6931472
  %v117 = vmul.f32 -0.5, %v104
  %v118 = vadd.f32 %v117, 1.0
  %v119 = vmul.f32 %v118, %v104
  %v120 = vand.u32 2147483647, %v104
  %vm121 = vcmp.lt.f32.partialorder %v120, 0.0004427343
  %v122 = vsel %vm121, %v119, %v116
  %v123 = vadd.f32 %v95, %v113
  %v124 = vadd.f32 %v96, %v122
  %v125 = vmul.f32 %v89, %v91
  %v126 = vmul.f32 %v90, %v92
  %v127 = vadd.f32 %v125, 0.0
  %v128 = vadd.f32 %v126, 0.0
  %v129 = vadd.f32 %v89, 0.0
  %v130 = vadd.f32 %v90, 0.0
  %v131 = vadd.f32 %v91, 0.0
  %v132 = vadd.f32 %v92, 0.0
  %v133 = vadd.f32 %v123, 0.0
  %v134 = vadd.f32 %v124, 0.0
  %v135 = vmul.f32 %v91, %v123
  %v136 = vmul.f32 %v92, %v124
  %v137 = vadd.f32 %v135, 0.0
  %v138 = vadd.f32 %v136, 0.0
  %vm139 = vcmp.eq.f32.partialorder %v91, 0.0
  %vm140 = vcmp.eq.f32.partialorder %v92, 0.0
  %v141 = vsel %vm139, 1, 0
  %v142 = vsel %vm140, 1, 0
  %v143 = vcvt.s32.f32 %v141
  %v144 = vcvt.s32.f32 %v142
  %v145 = vadd.f32 %v143, 0.0
  %v146 = vadd.f32 %v144, 0.0
  %vm147 = vcmp.eq.f32.partialorder %v91, 1.0
  %vm148 = vcmp.eq.f32.partialorder %v92, 1.0
  %v149 = vsel %vm147, 1, 0
  %v150 = vsel %vm148, 1, 0
  %v151 = vcvt.s32.f32 %v149
  %v152 = vcvt.s32.f32 %v150
  %v153 = vadd.f32 %v151, 0.0
  %v154 = vadd.f32 %v152, 0.0
  %v155 = vld [vmem:[#allocation2] sm:$0xff]
  %v156 = vld [vmem:[#allocation2 + $0x8] sm:$0xff]
  %v157 = vadd.f32 %v155, %v127
  %v158 = vadd.f32 %v156, %v128
  %159 = vst [vmem:[#allocation2] sm:$0xff] %v157
  %160 = vst [vmem:[#allocation2 + $0x8] sm:$0xff] %v158
  %s161 = scalar_lea.vmem [#allocation2], 16
  %v162 = vld [vmem:[%s161] sm:$0xff]
  %v163 = vld [vmem:[%s161 + $0x8] sm:$0xff]
  %v164 = vadd.f32 %v162, %v129
  %v165 = vadd.f32 %v163, %v130
  %166 = vst [vmem:[%s161] sm:$0xff] %v164
  %167 = vst [vmem:[%s161 + $0x8] sm:$0xff] %v165
  %s168 = scalar_lea.vmem [#allocation2], 32
  %v169 = vld [vmem:[%s168] sm:$0xff]
  %v170 = vld [vmem:[%s168 + $0x8] sm:$0xff]
  %v171 = vadd.f32 %v169, %v131
  %v172 = vadd.f32 %v170, %v132
  %173 = vst [vmem:[%s168] sm:$0xff] %v171
  %174 = vst [vmem:[%s168 + $0x8] sm:$0xff] %v172
  %s175 = scalar_lea.vmem [#allocation2], 48
  %v176 = vld [vmem:[%s175] sm:$0xff]
  %v177 = vld [vmem:[%s175 + $0x8] sm:$0xff]
  %v178 = vadd.f32 %v176, %v133
  %v179 = vadd.f32 %v177, %v134
  %180 = vst [vmem:[%s175] sm:$0xff] %v178
  %181 = vst [vmem:[%s175 + $0x8] sm:$0xff] %v179
  %s182 = scalar_lea.vmem [#allocation2], 64
  %v183 = vld [vmem:[%s182] sm:$0xff]
  %v184 = vld [vmem:[%s182 + $0x8] sm:$0xff]
  %v185 = vadd.f32 %v183, %v137
  %v186 = vadd.f32 %v184, %v138
  %187 = vst [vmem:[%s182] sm:$0xff] %v185
  %188 = vst [vmem:[%s182 + $0x8] sm:$0xff] %v186
  %s189 = scalar_lea.vmem [#allocation2], 80
  %v190 = vld [vmem:[%s189] sm:$0xff]
  %v191 = vld [vmem:[%s189 + $0x8] sm:$0xff]
  %v192 = vadd.f32 %v190, %v145
  %v193 = vadd.f32 %v191, %v146
  %194 = vst [vmem:[%s189] sm:$0xff] %v192
  %195 = vst [vmem:[%s189 + $0x8] sm:$0xff] %v193
  %s196 = scalar_lea.vmem [#allocation2], 96
  %v197 = vld [vmem:[%s196] sm:$0xff]
  %v198 = vld [vmem:[%s196 + $0x8] sm:$0xff]
  %v199 = vadd.f32 %v197, %v153
  %v200 = vadd.f32 %v198, %v154
  %201 = vst [vmem:[%s196] sm:$0xff] %v199
  %202 = vst [vmem:[%s196 + $0x8] sm:$0xff] %v200
  // Predicated region
  $region14: #{combined_loss.1} parent=0 // pred_check
    %p203 = pneg %p71
  $region15: #{combined_loss.1} parent=0 // pred_check_branch
    %205 = sbr.rel (%p203) target = $region17
  $region16: #{combined_loss.1} parent=0 // pred_region
    %v206 = vld [vmem:[#allocation2] sm:$0xff]
    %v207 = vld [vmem:[#allocation2 + $0x8] sm:$0xff]
    %v208 = vld [vmem:[#allocation2 + $0x10] sm:$0xff]
    %v209 = vld [vmem:[#allocation2 + $0x18] sm:$0xff]
    %v210 = vld [vmem:[#allocation2 + $0x20] sm:$0xff]
    %v211 = vld [vmem:[#allocation2 + $0x28] sm:$0xff]
    %v212 = vld [vmem:[#allocation2 + $0x30] sm:$0xff]
    %v213 = vld [vmem:[#allocation2 + $0x38] sm:$0xff]
    %v214 = vld [vmem:[#allocation2 + $0x40] sm:$0xff]
    %v215 = vld [vmem:[#allocation2 + $0x48] sm:$0xff]
    %v216 = vld [vmem:[#allocation2 + $0x50] sm:$0xff]
    %v217 = vld [vmem:[#allocation2 + $0x58] sm:$0xff]
    %v218 = vld [vmem:[#allocation2 + $0x60] sm:$0xff]
    %v219 = vld [vmem:[#allocation2 + $0x68] sm:$0xff]
    %220 = vst [vmem:[%s2] sm:$0xff] %v206
    %221 = vst [vmem:[%s2 + $0x8] sm:$0xff] %v207
    %222 = vst [vmem:[%s2 + $0x10] sm:$0xff] %v208
    %223 = vst [vmem:[%s2 + $0x18] sm:$0xff] %v209
    %224 = vst [vmem:[%s2 + $0x20] sm:$0xff] %v210
    %225 = vst [vmem:[%s2 + $0x28] sm:$0xff] %v211
    %226 = vst [vmem:[%s2 + $0x30] sm:$0xff] %v212
    %227 = vst [vmem:[%s2 + $0x38] sm:$0xff] %v213
    %228 = vst [vmem:[%s2 + $0x40] sm:$0xff] %v214
    %229 = vst [vmem:[%s2 + $0x48] sm:$0xff] %v215
    %230 = vst [vmem:[%s2 + $0x50] sm:$0xff] %v216
    %231 = vst [vmem:[%s2 + $0x58] sm:$0xff] %v217
    %232 = vst [vmem:[%s2 + $0x60] sm:$0xff] %v218
    %233 = vst [vmem:[%s2 + $0x68] sm:$0xff] %v219
  $region17: #{combined_loss.1} parent=0 // pred_fallthru
    _
  // Predicated region
  $region18: #{combined_loss.1} parent=0 // pred_check
    _
  $region19: #{combined_loss.1} parent=0 // pred_check_branch
    %235 = sbr.rel (0) target = $region21
  $region20: #{combined_loss.1} parent=0 // pred_region
    _
  $region21: #{combined_loss.1} parent=0 // pred_fallthru
    _
  // Predicated region
  $region22: #{combined_loss.1} parent=0 // pred_check
    _
  $region23: #{combined_loss.1} parent=0 // pred_check_branch
    %237 = sbr.rel (0) target = $region25
  $region24: #{combined_loss.1} parent=0 // pred_region
    _
  $region25: #{combined_loss.1} parent=0 // pred_fallthru
    _

</llo_original>
